<compile_context>
chip_gen: v7x
topology: tpu7x:2x2x1
jax: 0.10.0
libtpu: 0.0.40
codegen_flags: <defaults>
</compile_context>

<pallas_src>
import functools

import jax
import jax.numpy as jnp
from jax.experimental import pallas as pl
from jax.experimental.pallas import tpu as pltpu


def _se_kernel(x_ref, w1_ref, b1_ref, w2_ref, b2_ref, o_ref):
    # x_ref/o_ref: (bt, C_in, T_HW)  lane-dense along H*W
    # w1_ref: (C_sq, C_in) [matmul dtype], b1_ref: (C_sq, 1) f32
    # w2_ref: (C_in, C_sq) [matmul dtype], b2_ref: (C_in, 1) f32
    mm_dtype = w1_ref.dtype
    w1 = w1_ref[...]
    w2 = w2_ref[...]
    b1 = b1_ref[...]
    b2 = b2_ref[...]

    bt = x_ref.shape[0]
    for i in range(bt):                      # static, small (<=8) -> fully unrolled
        x = x_ref[i]                         # (C_in, T_HW), input dtype

        # fc1 (1x1 conv == channel matmul) + bias + ReLU; bf16 operands, f32 accum.
        h = jnp.dot(w1, x.astype(mm_dtype), preferred_element_type=jnp.float32)
        h = jnp.maximum(h + b1, 0.0)

        # fc2 + bias; fc1 accumulator downcast to matmul dtype for the MXU operand.
        z = jnp.dot(w2, h.astype(mm_dtype), preferred_element_type=jnp.float32)
        z = z + b2

        # sigmoid(z) = 1 / (1 + exp(-z)): exp on the EUP, approx reciprocal on the EUP.
        s = pl.reciprocal(1.0 + jnp.exp(-z), approx=True)

        # scale * input, elementwise in the input dtype, lane-dense store.
        o_ref[i] = (s.astype(x.dtype) * x).astype(o_ref.dtype)


def _round_down_128(v: int) -> int:
    return (v // 128) * 128


def _pick_tiles(n, c_in, hw, itemsize, target_block_bytes, max_batch_tile):
    """Pick (batch_tile, hw_tile) sized by bytes, lane-aligned, megacore-friendly."""
    row_bytes = c_in * itemsize

    # HW tile: largest multiple of 128 keeping one image-block <= target, or full hw.
    t_hw = _round_down_128(target_block_bytes // row_bytes)
    if t_hw == 0:
        t_hw = min(hw, 128)          # very large C_in: fall back to minimum lane tile
    elif t_hw >= hw:
        t_hw = hw                    # full extent is always a legal block size

    # Batch tile: amortize the ~0.35us/step overhead when a single image block is tiny.
    img_bytes = max(row_bytes * t_hw, 1)
    bt = max(1, min(n, max_batch_tile, target_block_bytes // img_bytes))

    # v7x has 2 TensorCores: keep >= 2 grid steps whenever there is work to split.
    if pl.cdiv(n, bt) * pl.cdiv(hw, t_hw) < 2:
        if n >= 2:
            bt = (n + 1) // 2
        elif t_hw == hw and hw >= 256:
            half = (hw + 1) // 2
            t_hw = max(128, ((half + 127) // 128) * 128)   # multiple of 128, < hw
    return bt, t_hw


@functools.partial(
    jax.jit,
    static_argnames=("target_block_bytes", "max_batch_tile", "matmul_dtype", "alias_input"),
)
def squeeze_excitation(x_nchw, w1, b1, w2, b2, *,
                       target_block_bytes=2 * 1024 * 1024,
                       max_batch_tile=8,
                       matmul_dtype=jnp.bfloat16,
                       alias_input=False):
    """Fused SE block (no-GAP variant).

    x_nchw: (N, C_in, H, W)
    w1: (C_sq, C_in)  (Conv2d 1x1 weight, squeezed)    b1: (C_sq,)
    w2: (C_in, C_sq)                                    b2: (C_in,)
    alias_input=True reuses x's HBM buffer for the output (pair with donation).
    """
    n, c_in, h, w = x_nchw.shape
    c_sq = w1.shape[0]
    hw = h * w
    itemsize = jnp.dtype(x_nchw.dtype).itemsize

    x3 = x_nchw.reshape(n, c_in, hw)          # free reshape, no transpose / HBM pass
    w1_mm = w1.astype(matmul_dtype)           # bf16 weights: MXU-native, half the DMA
    w2_mm = w2.astype(matmul_dtype)
    b1_col = b1.astype(jnp.float32).reshape(c_sq, 1)
    b2_col = b2.astype(jnp.float32).reshape(c_in, 1)

    bt, t_hw = _pick_tiles(n, c_in, hw, itemsize, target_block_bytes, max_batch_tile)
    grid = (pl.cdiv(n, bt), pl.cdiv(hw, t_hw))

    # Pipelined VMEM footprint: in + out, each double-buffered, + resident weights.
    block_bytes = bt * c_in * t_hw * itemsize
    w_bytes = ((w1_mm.size + w2_mm.size) * jnp.dtype(matmul_dtype).itemsize
               + (b1_col.size + b2_col.size) * 4)
    vmem_need = 4 * block_bytes + 2 * w_bytes + (1 << 20)
    vmem_limit = None
    if vmem_need > (14 << 20):                       # above the smallest scoped default (v5e)
        vmem_limit = int(min(vmem_need * 5 // 4, 48 << 20))   # stay under v7x 64 MiB physical

    cost = pl.CostEstimate(
        flops=4 * n * hw * c_in * c_sq + 6 * n * hw * c_in,
        transcendentals=n * hw * c_in,
        bytes_accessed=2 * n * c_in * hw * itemsize + w_bytes,
    )

    out3 = pl.pallas_call(
        _se_kernel,
        out_shape=jax.ShapeDtypeStruct((n, c_in, hw), x_nchw.dtype),
        grid_spec=pltpu.PrefetchScalarGridSpec(
            num_scalar_prefetch=0,
            grid=grid,
            in_specs=[
                pl.BlockSpec((bt, c_in, t_hw), lambda b, j: (b, 0, j)),   # x block
                pl.BlockSpec((c_sq, c_in), lambda b, j: (0, 0)),          # w1 (resident)
                pl.BlockSpec((c_sq, 1), lambda b, j: (0, 0)),             # b1
                pl.BlockSpec((c_in, c_sq), lambda b, j: (0, 0)),          # w2 (resident)
                pl.BlockSpec((c_in, 1), lambda b, j: (0, 0)),             # b2
            ],
            out_specs=pl.BlockSpec((bt, c_in, t_hw), lambda b, j: (b, 0, j)),
        ),
        compiler_params=pltpu.CompilerParams(
            dimension_semantics=("parallel", "parallel"),
            vmem_limit_bytes=vmem_limit,
        ),
        cost_estimate=cost,
        input_output_aliases={0: 0} if alias_input else {},
    )(x3, w1_mm, b1_col, w2_mm, b2_col)

    return out3.reshape(n, c_in, h, w)


def _reference(x_nchw, w1, b1, w2, b2, matmul_dtype=None):
    """Pure-JAX reference. matmul_dtype=None -> full f32 (PyTorch-equivalent);
    matmul_dtype=bf16 -> matches the kernel's MXU operand precision."""
    n, c, h, w = x_nchw.shape
    x = x_nchw.reshape(n, c, h * w)
    if matmul_dtype is not None:
        w1c, w2c, xc = w1.astype(matmul_dtype), w2.astype(matmul_dtype), x.astype(matmul_dtype)
    else:
        w1c, w2c, xc = w1, w2, x
    hid = jnp.einsum("sc,nck->nsk", w1c, xc,
                     preferred_element_type=jnp.float32) + b1[None, :, None]
    hid = jnp.maximum(hid, 0.0)
    hid_mm = hid.astype(matmul_dtype) if matmul_dtype is not None else hid
    z = jnp.einsum("cs,nsk->nck", w2c, hid_mm,
                   preferred_element_type=jnp.float32) + b2[None, :, None]
    s = jax.nn.sigmoid(z)
    return (s.astype(x.dtype) * x).reshape(n, c, h, w)


if __name__ == "__main__":
    # module defaults: input_channels=32, squeeze_channels=32
    N, C_IN, C_SQ, H, W = 2, 32, 32, 16, 16

    key = jax.random.PRNGKey(0)
    kx, k1, kb1, k2, kb2 = jax.random.split(key, 5)

    x = jax.random.normal(kx, (N, C_IN, H, W), dtype=jnp.float32)
    # Conv2d 1x1 weights stored channel-major: w1 (C_sq, C_in), w2 (C_in, C_sq)
    w1 = jax.random.normal(k1, (C_SQ, C_IN), dtype=jnp.float32) * 0.1
    b1 = jax.random.normal(kb1, (C_SQ,), dtype=jnp.float32) * 0.1
    w2 = jax.random.normal(k2, (C_IN, C_SQ), dtype=jnp.float32) * 0.1
    b2 = jax.random.normal(kb2, (C_IN,), dtype=jnp.float32) * 0.1

    out = squeeze_excitation(x, w1, b1, w2, b2)
    jax.block_until_ready(out)
    assert out.shape == x.shape

    # Matched-precision reference (bf16 MXU operands, f32 accum, exact sigmoid).
    ref_mm = _reference(x, w1, b1, w2, b2, matmul_dtype=jnp.bfloat16)
    assert jnp.allclose(out, ref_mm, atol=1e-2, rtol=1e-2), "mismatch vs matched reference"

    # Full-f32 PyTorch-equivalent reference (looser: bf16 MXU + approx reciprocal).
    ref_f32 = _reference(x, w1, b1, w2, b2)
    assert jnp.allclose(out, ref_f32, atol=5e-2, rtol=5e-2), "mismatch vs f32 reference"

    print("KERNEL_OK")
</pallas_src>

<mosaic_0001>
module attributes {stable_mosaic.version = 11 : i64} {
  func.func @_se_kernel(%arg0: i32, %arg1: i32, %arg2: memref<1x32x256xf32, #tpu.memory_space<vmem>>, %arg3: memref<32x32xbf16, #tpu.memory_space<vmem>>, %arg4: memref<32x1xf32, #tpu.memory_space<vmem>>, %arg5: memref<32x32xbf16, #tpu.memory_space<vmem>>, %arg6: memref<32x1xf32, #tpu.memory_space<vmem>>, %arg7: memref<1x32x256xf32, #tpu.memory_space<vmem>>) attributes {dimension_semantics = [#tpu.dimension_semantics<parallel>, #tpu.dimension_semantics<parallel>], iteration_bounds = array<i64: 2, 1>, scalar_prefetch = 0 : i64, scratch_operands = 0 : i64, tpu.core_type = #tpu.core_type<tc>, window_params = [{transform_indices = @transform_0, window_bounds = array<i64: 1, 32, 256>}, {pipeline_mode = #tpu.pipeline_mode<synchronous>, transform_indices = @transform_1, window_bounds = array<i64: 32, 32>}, {pipeline_mode = #tpu.pipeline_mode<synchronous>, transform_indices = @transform_2, window_bounds = array<i64: 32, 1>}, {pipeline_mode = #tpu.pipeline_mode<synchronous>, transform_indices = @transform_3, window_bounds = array<i64: 32, 32>}, {pipeline_mode = #tpu.pipeline_mode<synchronous>, transform_indices = @transform_4, window_bounds = array<i64: 32, 1>}, {transform_indices = @transform_5, window_bounds = array<i64: 1, 32, 256>}]} {
    %c0 = arith.constant 0 : index
    %c0_0 = arith.constant 0 : index
    %0 = vector.load %arg3[%c0, %c0_0] : memref<32x32xbf16, #tpu.memory_space<vmem>>, vector<32x32xbf16>
    %c0_1 = arith.constant 0 : index
    %c0_2 = arith.constant 0 : index
    %1 = vector.load %arg5[%c0_1, %c0_2] : memref<32x32xbf16, #tpu.memory_space<vmem>>, vector<32x32xbf16>
    %c0_3 = arith.constant 0 : index
    %c0_4 = arith.constant 0 : index
    %2 = vector.load %arg4[%c0_3, %c0_4] : memref<32x1xf32, #tpu.memory_space<vmem>>, vector<32x1xf32>
    %c0_5 = arith.constant 0 : index
    %c0_6 = arith.constant 0 : index
    %3 = vector.load %arg6[%c0_5, %c0_6] : memref<32x1xf32, #tpu.memory_space<vmem>>, vector<32x1xf32>
    %c0_7 = arith.constant 0 : index
    %c0_8 = arith.constant 0 : index
    %c0_9 = arith.constant 0 : index
    %4 = vector.load %arg2[%c0_7, %c0_8, %c0_9] : memref<1x32x256xf32, #tpu.memory_space<vmem>>, vector<1x32x256xf32>
    %5 = vector.shape_cast %4 : vector<1x32x256xf32> to vector<32x256xf32>
    %6 = arith.truncf %5 : vector<32x256xf32> to vector<32x256xbf16>
    %cst = arith.constant dense<0.000000e+00> : vector<32x256xf32>
    %7 = tpu.matmul %0, %6, %cst {dimension_numbers = #tpu.dot_dimension_numbers<[1], [0], [0], [1], [0, 0, 1, 1], [], []>} : vector<32x32xbf16>, vector<32x256xbf16>, vector<32x256xf32> -> vector<32x256xf32>
    %8 = vector.broadcast %2 : vector<32x1xf32> to vector<32x256xf32>
    %9 = arith.addf %7, %8 : vector<32x256xf32>
    %cst_10 = arith.constant 0.000000e+00 : f32
    %10 = vector.broadcast %cst_10 : f32 to vector<32x256xf32>
    %11 = arith.maximumf %9, %10 : vector<32x256xf32>
    %12 = arith.truncf %11 : vector<32x256xf32> to vector<32x256xbf16>
    %cst_11 = arith.constant dense<0.000000e+00> : vector<32x256xf32>
    %13 = tpu.matmul %1, %12, %cst_11 {dimension_numbers = #tpu.dot_dimension_numbers<[1], [0], [0], [1], [0, 0, 1, 1], [], []>} : vector<32x32xbf16>, vector<32x256xbf16>, vector<32x256xf32> -> vector<32x256xf32>
    %14 = vector.broadcast %3 : vector<32x1xf32> to vector<32x256xf32>
    %15 = arith.addf %13, %14 : vector<32x256xf32>
    %cst_12 = arith.constant 0.000000e+00 : f32
    %16 = vector.broadcast %cst_12 : f32 to vector<32x256xf32>
    %17 = arith.subf %16, %15 : vector<32x256xf32>
    %18 = math.exp %17 : vector<32x256xf32>
    %cst_13 = arith.constant 1.000000e+00 : f32
    %19 = vector.broadcast %cst_13 : f32 to vector<32x256xf32>
    %20 = arith.addf %19, %18 : vector<32x256xf32>
    %21 = tpu.reciprocal %20 {approx = true} : vector<32x256xf32> -> vector<32x256xf32>
    %22 = arith.mulf %21, %5 : vector<32x256xf32>
    %c0_14 = arith.constant 0 : index
    %c0_15 = arith.constant 0 : index
    %c0_16 = arith.constant 0 : index
    %23 = vector.load %arg7[%c0_14, %c0_15, %c0_16] : memref<1x32x256xf32, #tpu.memory_space<vmem>>, vector<1x32x256xf32>
    %24 = vector.shape_cast %23 : vector<1x32x256xf32> to vector<32x256xf32>
    %25 = vector.shape_cast %22 : vector<32x256xf32> to vector<1x32x256xf32>
    tpu.vector_store %arg7[%c0_14, %c0_15, %c0_16], %25 {strides = array<i32>} : memref<1x32x256xf32, #tpu.memory_space<vmem>>, vector<1x32x256xf32>,
    return
  }
  func.func @transform_0(%arg0: i32, %arg1: i32) -> (i32, i32, i32) {
    %c0_i32 = arith.constant 0 : i32
    %c0_i32_0 = arith.constant 0 : i32
    return %arg0, %c0_i32, %arg1 : i32, i32, i32
  }
  func.func @transform_1(%arg0: i32, %arg1: i32) -> (i32, i32) {
    %c0_i32 = arith.constant 0 : i32
    %c0_i32_0 = arith.constant 0 : i32
    %c0_i32_1 = arith.constant 0 : i32
    return %c0_i32, %c0_i32_0 : i32, i32
  }
  func.func @transform_2(%arg0: i32, %arg1: i32) -> (i32, i32) {
    %c0_i32 = arith.constant 0 : i32
    %c0_i32_0 = arith.constant 0 : i32
    %c0_i32_1 = arith.constant 0 : i32
    return %c0_i32, %c0_i32_0 : i32, i32
  }
  func.func @transform_3(%arg0: i32, %arg1: i32) -> (i32, i32) {
    %c0_i32 = arith.constant 0 : i32
    %c0_i32_0 = arith.constant 0 : i32
    %c0_i32_1 = arith.constant 0 : i32
    return %c0_i32, %c0_i32_0 : i32, i32
  }
  func.func @transform_4(%arg0: i32, %arg1: i32) -> (i32, i32) {
    %c0_i32 = arith.constant 0 : i32
    %c0_i32_0 = arith.constant 0 : i32
    %c0_i32_1 = arith.constant 0 : i32
    return %c0_i32, %c0_i32_0 : i32, i32
  }
  func.func @transform_5(%arg0: i32, %arg1: i32) -> (i32, i32, i32) {
    %c0_i32 = arith.constant 0 : i32
    %c0_i32_0 = arith.constant 0 : i32
    return %arg0, %c0_i32, %arg1 : i32, i32, i32
  }
}

</mosaic_0001>

<llo_original>
// kernel: squeeze_excitation.1
$region0: #{squeeze_excitation.1}
  #allocation0 [shape = 'u32[]', space=smem, size = 0x4, offset = 0x4, fixed_abs, tag = 'smem constant byte address 0x4 - core index']
  #allocation1 [shape = 'u32[144,128]{1,0:T(1,128)}', space=vmem, size = 0x12000, scoped, tag = 'internal scratch']
  %s0 = inlined_call_operand.vmem [shape: f32[2,32,256], index: 0, kind: input, shape index: {}]
  %s1 = inlined_call_operand.vmem [shape: bf16[32,32], index: 1, kind: input, shape index: {}]
  %s2 = inlined_call_operand.vmem [shape: f32[32,1], index: 2, kind: input, shape index: {}]
  %s3 = inlined_call_operand.vmem [shape: bf16[32,32], index: 3, kind: input, shape index: {}]
  %s4 = inlined_call_operand.vmem [shape: f32[32,1], index: 4, kind: input, shape index: {}]
  %s5 = inlined_call_operand.vmem [shape: f32[2,32,256], index: 5, kind: output, shape index: {}]
  %s6 = sld [smem:[#allocation0]]
  $region53: #{squeeze_excitation.1} parent=0
    _
  %s8 = ssub.s32 1, %s6
  %s9 = scalar_select 0, %s8, %s6
  loop: start=0, step=1, limit=4
  $region2: #{squeeze_excitation.1} parent=0 // loop_pre_header
    _
  $region3: #{squeeze_excitation.1} parent=0 // loop_header
    %s11 = sphi 0, %s15
    %p12 = scmp.ge.s32.totalorder %s11, 4
    %s18 = sphi 0, %s30
    %s19 = sphi 0, %s26
    %s20 = sphi 0, %s18
    %s21 = sphi 0, %s19
    %s22 = sphi 0, %s20
    %s23 = sphi 0, %s21
    %s35 = sphi 0, %s37
    %s38 = sphi 0, %s35
    %s39 = sphi 0, %s38
    %s55 = sphi 0, %s39
    %s59 = sphi 0, %s59
    %s61 = sphi 0, %s59
    %s62 = sphi 0, %s61
    %s76 = sphi 0, %s62
    %s80 = sphi 0, %s80
    %s82 = sphi 0, %s80
    %s83 = sphi 0, %s82
    %s97 = sphi 0, %s83
    %s101 = sphi 0, %s101
    %s103 = sphi 0, %s101
    %s104 = sphi 0, %s103
    %s118 = sphi 0, %s104
    %s122 = sphi 0, %s122
    %s124 = sphi 0, %s122
    %s125 = sphi 0, %s124
    %s139 = sphi 0, %s125
    %s147 = sphi 0, %s149
    %s150 = sphi 0, %s147
    %s151 = sphi 0, %s150
    %s167 = sphi 0, %s151
  $region4: #{squeeze_excitation.1} parent=0 // loop_header_branch
    %14 = sbr.rel (%p12) target = $region8
  $region5: #{squeeze_excitation.1} parent=0 // loop_body
    %s16 = ssub.s32 %s11, 1
    %s17 = ssub.s32 %s11, 2
    %s24 = sadd.s32 1, %s19
    %p25 = scmp.ge.s32.totalorder %s24, 1
    %s26 = scalar_select %p25, 0, %s24
    %s27 = sadd.s32 1, %s18
    %s28 = scalar_select %p25, %s27, %s18
    %p29 = scmp.ge.s32.totalorder %s28, 2
    %s30 = scalar_select %p29, 0, %s28
    %s31 = ssub.s32 %s18, %s30
    %s32 = ssub.s32 %s19, %s26
    %s33 = sor.u32 %s31, %s32
    %p34 = scmp.eq.s32.totalorder %s33, 0
    %s36 = sadd.s32 %s35, 1
    %s37 = scalar_select %p34, %s35, %s36
    %p40 = pneg %p34
    %p41 = scmp.eq.s32.totalorder %s11, 1
    %p42 = por %p40, %p41
    %p43 = scmp.ne.s32.totalorder %s35, %s38
    %p44 = scmp.eq.s32.totalorder %s11, 0
    %p45 = por %p43, %p44
    %p46 = scmp.ne.s32.totalorder %s35, %s38
    %p47 = scmp.eq.s32.totalorder %s16, 1
    %p48 = por %p46, %p47
    %p49 = scmp.ne.s32.totalorder %s38, %s39
    %p50 = scmp.eq.s32.totalorder %s16, 0
    %p51 = por %p49, %p50
    %p52 = scmp.ne.s32.totalorder %s38, %s39
    %p53 = scmp.eq.s32.totalorder %s17, 1
    %p54 = por %p52, %p53
    %p56 = scmp.ne.s32.totalorder %s39, %s55
    %p57 = scmp.eq.s32.totalorder %s17, 0
    %p58 = por %p56, %p57
    %s60 = sadd.s32 %s59, 1
    %p63 = scmp.eq.s32.totalorder %s11, 1
    %p64 = scmp.ne.s32.totalorder %s59, %s61
    %p65 = scmp.eq.s32.totalorder %s11, 0
    %p66 = por %p64, %p65
    %p67 = scmp.ne.s32.totalorder %s59, %s61
    %p68 = scmp.eq.s32.totalorder %s16, 1
    %p69 = por %p67, %p68
    %p70 = scmp.ne.s32.totalorder %s61, %s62
    %p71 = scmp.eq.s32.totalorder %s16, 0
    %p72 = por %p70, %p71
    %p73 = scmp.ne.s32.totalorder %s61, %s62
    %p74 = scmp.eq.s32.totalorder %s17, 1
    %p75 = por %p73, %p74
    %p77 = scmp.ne.s32.totalorder %s62, %s76
    %p78 = scmp.eq.s32.totalorder %s17, 0
    %p79 = por %p77, %p78
    %s81 = sadd.s32 %s80, 1
    %p84 = scmp.eq.s32.totalorder %s11, 1
    %p85 = scmp.ne.s32.totalorder %s80, %s82
    %p86 = scmp.eq.s32.totalorder %s11, 0
    %p87 = por %p85, %p86
    %p88 = scmp.ne.s32.totalorder %s80, %s82
    %p89 = scmp.eq.s32.totalorder %s16, 1
    %p90 = por %p88, %p89
    %p91 = scmp.ne.s32.totalorder %s82, %s83
    %p92 = scmp.eq.s32.totalorder %s16, 0
    %p93 = por %p91, %p92
    %p94 = scmp.ne.s32.totalorder %s82, %s83
    %p95 = scmp.eq.s32.totalorder %s17, 1
    %p96 = por %p94, %p95
    %p98 = scmp.ne.s32.totalorder %s83, %s97
    %p99 = scmp.eq.s32.totalorder %s17, 0
    %p100 = por %p98, %p99
    %s102 = sadd.s32 %s101, 1
    %p105 = scmp.eq.s32.totalorder %s11, 1
    %p106 = scmp.ne.s32.totalorder %s101, %s103
    %p107 = scmp.eq.s32.totalorder %s11, 0
    %p108 = por %p106, %p107
    %p109 = scmp.ne.s32.totalorder %s101, %s103
    %p110 = scmp.eq.s32.totalorder %s16, 1
    %p111 = por %p109, %p110
    %p112 = scmp.ne.s32.totalorder %s103, %s104
    %p113 = scmp.eq.s32.totalorder %s16, 0
    %p114 = por %p112, %p113
    %p115 = scmp.ne.s32.totalorder %s103, %s104
    %p116 = scmp.eq.s32.totalorder %s17, 1
    %p117 = por %p115, %p116
    %p119 = scmp.ne.s32.totalorder %s104, %s118
    %p120 = scmp.eq.s32.totalorder %s17, 0
    %p121 = por %p119, %p120
    %s123 = sadd.s32 %s122, 1
    %p126 = scmp.eq.s32.totalorder %s11, 1
    %p127 = scmp.ne.s32.totalorder %s122, %s124
    %p128 = scmp.eq.s32.totalorder %s11, 0
    %p129 = por %p127, %p128
    %p130 = scmp.ne.s32.totalorder %s122, %s124
    %p131 = scmp.eq.s32.totalorder %s16, 1
    %p132 = por %p130, %p131
    %p133 = scmp.ne.s32.totalorder %s124, %s125
    %p134 = scmp.eq.s32.totalorder %s16, 0
    %p135 = por %p133, %p134
    %p136 = scmp.ne.s32.totalorder %s124, %s125
    %p137 = scmp.eq.s32.totalorder %s17, 1
    %p138 = por %p136, %p137
    %p140 = scmp.ne.s32.totalorder %s125, %s139
    %p141 = scmp.eq.s32.totalorder %s17, 0
    %p142 = por %p140, %p141
    %s143 = ssub.s32 %s18, %s30
    %s144 = ssub.s32 %s19, %s26
    %s145 = sor.u32 %s143, %s144
    %p146 = scmp.eq.s32.totalorder %s145, 0
    %s148 = sadd.s32 %s147, 1
    %s149 = scalar_select %p146, %s147, %s148
    %p152 = pneg %p146
    %p153 = scmp.eq.s32.totalorder %s11, 1
    %p154 = por %p152, %p153
    %p155 = scmp.ne.s32.totalorder %s147, %s150
    %p156 = scmp.eq.s32.totalorder %s11, 0
    %p157 = por %p155, %p156
    %p158 = scmp.ne.s32.totalorder %s147, %s150
    %p159 = scmp.eq.s32.totalorder %s16, 1
    %p160 = por %p158, %p159
    %p161 = scmp.ne.s32.totalorder %s150, %s151
    %p162 = scmp.eq.s32.totalorder %s16, 0
    %p163 = por %p161, %p162
    %p164 = scmp.ne.s32.totalorder %s150, %s151
    %p165 = scmp.eq.s32.totalorder %s17, 1
    %p166 = por %p164, %p165
    %p168 = scmp.ne.s32.totalorder %s151, %s167
    %p169 = scmp.eq.s32.totalorder %s17, 0
    %p170 = por %p168, %p169
    %p171 = scmp.le.s32.totalorder 1, %s11
    %p172 = scmp.lt.s32.totalorder %s11, 3
    %p173 = pnand %p171, %p172
    %p174 = pneg %p173
    // Predicated region
    $region9: #{squeeze_excitation.1} parent=5 // pred_check
      _
    $region10: #{squeeze_excitation.1} parent=5 // pred_check_branch
      %176 = sbr.rel (%p173) target = $region12
    $region11: #{squeeze_excitation.1} parent=5 // pred_region
      %s177 = ssub.s32 %s11, 1
      // Predicated region
      $region13: #{squeeze_excitation.1} parent=11 // pred_check
        %p178 = pneg %p72
      $region14: #{squeeze_excitation.1} parent=11 // pred_check_branch
        %180 = sbr.rel (%p178) target = $region16
      $region15: #{squeeze_excitation.1} parent=11 // pred_region
        _
      $region16: #{squeeze_excitation.1} parent=11 // pred_fallthru
        _
      // Predicated region
      $region17: #{squeeze_excitation.1} parent=11 // pred_check
        %p181 = pneg %p93
      $region18: #{squeeze_excitation.1} parent=11 // pred_check_branch
        %183 = sbr.rel (%p181) target = $region20
      $region19: #{squeeze_excitation.1} parent=11 // pred_region
        _
      $region20: #{squeeze_excitation.1} parent=11 // pred_fallthru
        _
      // Predicated region
      $region21: #{squeeze_excitation.1} parent=11 // pred_check
        %p184 = pneg %p114
      $region22: #{squeeze_excitation.1} parent=11 // pred_check_branch
        %186 = sbr.rel (%p184) target = $region24
      $region23: #{squeeze_excitation.1} parent=11 // pred_region
        _
      $region24: #{squeeze_excitation.1} parent=11 // pred_fallthru
        _
      // Predicated region
      $region25: #{squeeze_excitation.1} parent=11 // pred_check
        %p187 = pneg %p135
      $region26: #{squeeze_excitation.1} parent=11 // pred_check_branch
        %189 = sbr.rel (%p187) target = $region28
      $region27: #{squeeze_excitation.1} parent=11 // pred_region
        _
      $region28: #{squeeze_excitation.1} parent=11 // pred_fallthru
        _
    $region12: #{squeeze_excitation.1} parent=5 // pred_fallthru
      _
    %p190 = scmp.lt.s32.totalorder %s11, 2
    // Predicated region
    $region29: #{squeeze_excitation.1} parent=5 // pred_check
      %p191 = pneg %p190
    $region30: #{squeeze_excitation.1} parent=5 // pred_check_branch
      %193 = sbr.rel (%p191) target = $region32
    $region31: #{squeeze_excitation.1} parent=5 // pred_region
      // Predicated region
      $region33: #{squeeze_excitation.1} parent=31 // pred_check
        %p194 = pneg %p45
      $region34: #{squeeze_excitation.1} parent=31 // pred_check_branch
        %196 = sbr.rel (%p194) target = $region36
      $region35: #{squeeze_excitation.1} parent=31 // pred_region
        %s197 = smul.u32 2, %s19
        %p198 = scmp.lt.s32.totalorder %s18, 1
        %s199 = scalar_select %p198, %s18, 1
        %p200 = scmp.lt.s32.totalorder %s197, 1
        %s201 = scalar_select %p200, %s197, 1
        %s202 = smul.addr %s199, 8
        %s203 = sadd.s32 %s201, %s202
        %s204 = smul.addr %s203, 8
        %s205 = scalar_lea.vmem %s0, %s204
        %s206 = smul.u32 2, %s19
      $region36: #{squeeze_excitation.1} parent=31 // pred_fallthru
        _
    $region32: #{squeeze_excitation.1} parent=5 // pred_fallthru
      _
    %p207 = scmp.le.s32.totalorder 1, %s11
    %p208 = scmp.lt.s32.totalorder %s11, 3
    %p209 = pnand %p207, %p208
    %p210 = pneg %p209
    // Predicated region
    $region37: #{squeeze_excitation.1} parent=5 // pred_check
      _
    $region38: #{squeeze_excitation.1} parent=5 // pred_check_branch
      %212 = sbr.rel (%p209) target = $region40
    $region39: #{squeeze_excitation.1} parent=5 // pred_region
      %s213 = ssub.s32 %s11, 1
      %s214 = smul.u32 2, %s21
      %p215 = scmp.lt.s32.totalorder %s20, 1
      %s216 = scalar_select %p215, %s20, 1
      %p217 = scmp.lt.s32.totalorder %s214, 1
      %s218 = scalar_select %p217, %s214, 1
      %s219 = smul.addr %s216, 8
      %s220 = sadd.s32 %s218, %s219
      %s221 = smul.addr %s220, 8
      %s222 = scalar_lea.vmem %s0, %s221
      %p223 = pneg %p51
      %p224 = pneg %p48
      %p225 = pneg %p72
      %p226 = pneg %p69
      %p227 = pneg %p93
      %p228 = pneg %p90
      %p229 = pneg %p114
      %p230 = pneg %p111
      %p231 = pneg %p135
      %p232 = pneg %p132
      %p233 = pneg %p163
      %p234 = pneg %p160
      %s235 = smul.u32 2, %s21
      %p236 = scmp.lt.s32.totalorder %s20, 1
      %s237 = scalar_select %p236, %s20, 1
      %p238 = scmp.lt.s32.totalorder %s235, 1
      %s239 = scalar_select %p238, %s235, 1
      %s240 = smul.addr %s237, 8
      %s241 = sadd.s32 %s239, %s240
      %s242 = smul.addr %s241, 8
      %s243 = scalar_lea.vmem %s5, %s242
      %s244 = smul.u32 2, %s21
      %p245 = scmp.lt.s32.totalorder %s20, 1
      %s246 = scalar_select %p245, %s20, 1
      %p247 = scmp.lt.s32.totalorder %s244, 1
      %s248 = scalar_select %p247, %s244, 1
      %s249 = smul.addr %s246, 8
      %s250 = sadd.s32 %s248, %s249
      %s251 = smul.addr %s250, 8
      %s252 = scalar_lea.vmem %s0, %s251
      %s253 = smul.u32 2, %s21
      %s254 = smul.u32 2, %s21
      %p255 = scmp.lt.s32.totalorder %s20, 1
      %s256 = scalar_select %p255, %s20, 1
      %p257 = scmp.lt.s32.totalorder %s254, 1
      %s258 = scalar_select %p257, %s254, 1
      %s259 = smul.addr %s256, 8
      %s260 = sadd.s32 %s258, %s259
      %s261 = smul.addr %s260, 8
      %s262 = scalar_lea.vmem %s5, %s261
      %s263 = smul.u32 2, %s21
      %v265 = vld [vmem:[%s1] sm:$0xf]
      %v266 = vld [vmem:[%s1 + $0x4] sm:$0xf]
      %v267 = vld [vmem:[%s1 + $0x8] sm:$0xf]
      %v268 = vld [vmem:[%s1 + $0xc] sm:$0xf]
      %v269 = vld [vmem:[%s3] sm:$0xf]
      %v270 = vld [vmem:[%s3 + $0x4] sm:$0xf]
      %v271 = vld [vmem:[%s3 + $0x8] sm:$0xf]
      %v272 = vld [vmem:[%s3 + $0xc] sm:$0xf]
      %v273 = vld [vmem:[%s2] sm:$0xff]
      %v274 = vld [vmem:[%s2 + $0x8] sm:$0xff]
      %v275 = vld [vmem:[%s2 + $0x10] sm:$0xff]
      %v276 = vld [vmem:[%s2 + $0x18] sm:$0xff]
      %v277 = vld [vmem:[%s4] sm:$0xff]
      %v278 = vld [vmem:[%s4 + $0x8] sm:$0xff]
      %v279 = vld [vmem:[%s4 + $0x10] sm:$0xff]
      %v280 = vld [vmem:[%s4 + $0x18] sm:$0xff]
      %v281 = vld [vmem:[%s252] sm:$0xff]
      %v282 = vld [vmem:[%s252 + $0x8] sm:$0xff]
      %v283 = vld [vmem:[%s252 + $0x10] sm:$0xff]
      %v284 = vld [vmem:[%s252 + $0x18] sm:$0xff]
      %v285 = vld [vmem:[%s252 + $0x20] sm:$0xff]
      %v286 = vld [vmem:[%s252 + $0x28] sm:$0xff]
      %v287 = vld [vmem:[%s252 + $0x30] sm:$0xff]
      %v288 = vld [vmem:[%s252 + $0x38] sm:$0xff]
      %v289 = vpack.c.bf16 %v283, %v281
      %v290 = vpack.c.bf16 %v284, %v282
      %v291 = vpack.c.bf16 %v287, %v285
      %v292 = vpack.c.bf16 %v288, %v286
      %294 = vset.pattern.permute.xlu0 0
      %295 = vperm.xlu0 %294, %v273
      %v296 = vpop.permute.xlu0 %295
      %299 = vset.pattern.permute.xlu0 0
      %300 = vperm.xlu0 %299, %v274
      %v301 = vpop.permute.xlu0 %300
      %304 = vset.pattern.permute.xlu0 0
      %305 = vperm.xlu0 %304, %v275
      %v306 = vpop.permute.xlu0 %305
      %309 = vset.pattern.permute.xlu0 0
      %310 = vperm.xlu0 %309, %v276
      %v311 = vpop.permute.xlu0 %310
      %v317 = vunpack.c.l.b16 %v265
      %v318 = vunpack.c.l.b16 %v266
      %v319 = vunpack.c.l.b16 %v267
      %v320 = vunpack.c.l.b16 %v268
      %v321 = vpack.c.b16 %v318, %v317
      %v322 = vpack.c.b16 %v320, %v319
      %vm323 = vcmask 261120
      %v325 = vsel %vm323, %v321, 0
      %v328 = vsel %vm323, %v322, 0
      %330 = vmatprep.subr.bf16.mxu0 %v290
      %331 = vmatpush1.bf16.msra.mxu0 %v289
      %332 = vmatprep.subr.bf16.mxu0 %v292
      %333 = vmatpush1.bf16.msra.mxu0 %v291
      %334 = vmatprep.subr.bf16.mxu0 0
      %335 = vmatpush1.bf16.msra.mxu0 0
      %336 = vmatprep.subr.bf16.mxu0 0
      %337 = vmatpush1.bf16.msra.mxu0 0
      %338 = vmatprep.subr.bf16.mxu0 0
      %339 = vmatpush1.bf16.msra.mxu0 0
      %340 = vmatprep.subr.bf16.mxu0 0
      %341 = vmatpush1.bf16.msra.mxu0 0
      %342 = vmatprep.subr.bf16.mxu0 0
      %343 = vmatpush1.bf16.msra.mxu0 0
      %344 = vmatprep.subr.bf16.mxu0 0
      %345 = vmatpush1.bf16.msra.mxu0 0
      %346 = vmatprep.subr.bf16.mxu0 0
      %347 = vmatpush1.bf16.msra.mxu0 0
      %348 = vmatprep.subr.bf16.mxu0 0
      %349 = vmatpush1.bf16.msra.mxu0 0
      %350 = vmatprep.subr.bf16.mxu0 0
      %351 = vmatpush1.bf16.msra.mxu0 0
      %352 = vmatprep.subr.bf16.mxu0 0
      %353 = vmatpush1.bf16.msra.mxu0 0
      %354 = vmatprep.subr.bf16.mxu0 0
      %355 = vmatpush1.bf16.msra.mxu0 0
      %356 = vmatprep.subr.bf16.mxu0 0
      %357 = vmatpush1.bf16.msra.mxu0 0
      %358 = vmatprep.subr.bf16.mxu0 0
      %359 = vmatpush1.bf16.msra.mxu0 0
      %360 = vmatprep.subr.bf16.mxu0 0
      %361 = vmatpush1.bf16.msra.mxu0 0
      %362 = vmatprep.mubr.bf16.mxu0 0
      %363 = vmatmul.mubr.bf16.gmra.mrb[0].mxu0 %v325
      %v364 = vpop.f32.mrb[0].mxu0
      %v365 = vadd.f32 %v296, %v364
      %v366 = vpop.f32.mrb[0].mxu0
      %v367 = vadd.f32 %v296, %v366
      %v368 = vpop.f32.mrb[0].mxu0
      %v369 = vadd.f32 %v301, %v368
      %v370 = vpop.f32.mrb[0].mxu0
      %v371 = vadd.f32 %v301, %v370
      %372 = vmatprep.mubr.bf16.mxu0 0
      %373 = vmatmul.mubr.bf16.gmra.mrb[0].mxu0 %v328
      %v374 = vpop.f32.mrb[0].mxu0
      %v375 = vadd.f32 %v306, %v374
      %v376 = vpop.f32.mrb[0].mxu0
      %v377 = vadd.f32 %v306, %v376
      %v378 = vpop.f32.mrb[0].mxu0
      %v379 = vadd.f32 %v311, %v378
      %v380 = vpop.f32.mrb[0].mxu0
      %v381 = vadd.f32 %v311, %v380
      %382 = vdwg.mxu0
      %v383 = vmax.f32 %v365, 0.0
      %v384 = vmax.f32 %v367, 0.0
      %v385 = vmax.f32 %v369, 0.0
      %v386 = vmax.f32 %v371, 0.0
      %v387 = vmax.f32 %v375, 0.0
      %v388 = vmax.f32 %v377, 0.0
      %v389 = vmax.f32 %v379, 0.0
      %v390 = vmax.f32 %v381, 0.0
      %v391 = vpack.c.bf16 %v385, %v383
      %v392 = vpack.c.bf16 %v386, %v384
      %v393 = vpack.c.bf16 %v389, %v387
      %v394 = vpack.c.bf16 %v390, %v388
      %396 = vset.pattern.permute.xlu0 0
      %397 = vperm.xlu0 %396, %v277
      %v398 = vpop.permute.xlu0 %397
      %401 = vset.pattern.permute.xlu0 0
      %402 = vperm.xlu0 %401, %v278
      %v403 = vpop.permute.xlu0 %402
      %406 = vset.pattern.permute.xlu0 0
      %407 = vperm.xlu0 %406, %v279
      %v408 = vpop.permute.xlu0 %407
      %411 = vset.pattern.permute.xlu0 0
      %412 = vperm.xlu0 %411, %v280
      %v413 = vpop.permute.xlu0 %412
      %v419 = vunpack.c.l.b16 %v269
      %v420 = vunpack.c.l.b16 %v270
      %v421 = vunpack.c.l.b16 %v271
      %v422 = vunpack.c.l.b16 %v272
      %v423 = vpack.c.b16 %v420, %v419
      %v424 = vpack.c.b16 %v422, %v421
      %v426 = vsel %vm323, %v423, 0
      %v429 = vsel %vm323, %v424, 0
      %431 = vmatprep.subr.bf16.mxu0 %v392
      %432 = vmatpush1.bf16.msra.mxu0 %v391
      %433 = vmatprep.subr.bf16.mxu0 %v394
      %434 = vmatpush1.bf16.msra.mxu0 %v393
      %435 = vmatprep.subr.bf16.mxu0 0
      %436 = vmatpush1.bf16.msra.mxu0 0
      %437 = vmatprep.subr.bf16.mxu0 0
      %438 = vmatpush1.bf16.msra.mxu0 0
      %439 = vmatprep.subr.bf16.mxu0 0
      %440 = vmatpush1.bf16.msra.mxu0 0
      %441 = vmatprep.subr.bf16.mxu0 0
      %442 = vmatpush1.bf16.msra.mxu0 0
      %443 = vmatprep.subr.bf16.mxu0 0
      %444 = vmatpush1.bf16.msra.mxu0 0
      %445 = vmatprep.subr.bf16.mxu0 0
      %446 = vmatpush1.bf16.msra.mxu0 0
      %447 = vmatprep.subr.bf16.mxu0 0
      %448 = vmatpush1.bf16.msra.mxu0 0
      %449 = vmatprep.subr.bf16.mxu0 0
      %450 = vmatpush1.bf16.msra.mxu0 0
      %451 = vmatprep.subr.bf16.mxu0 0
      %452 = vmatpush1.bf16.msra.mxu0 0
      %453 = vmatprep.subr.bf16.mxu0 0
      %454 = vmatpush1.bf16.msra.mxu0 0
      %455 = vmatprep.subr.bf16.mxu0 0
      %456 = vmatpush1.bf16.msra.mxu0 0
      %457 = vmatprep.subr.bf16.mxu0 0
      %458 = vmatpush1.bf16.msra.mxu0 0
      %459 = vmatprep.subr.bf16.mxu0 0
      %460 = vmatpush1.bf16.msra.mxu0 0
      %461 = vmatprep.subr.bf16.mxu0 0
      %462 = vmatpush1.bf16.msra.mxu0 0
      %463 = vmatprep.mubr.bf16.mxu0 0
      %464 = vmatmul.mubr.bf16.gmra.mrb[0].mxu0 %v426
      %v465 = vpop.f32.mrb[0].mxu0
      %v466 = vadd.f32 %v398, %v465
      %v467 = vpop.f32.mrb[0].mxu0
      %v468 = vadd.f32 %v398, %v467
      %v469 = vpop.f32.mrb[0].mxu0
      %v470 = vadd.f32 %v403, %v469
      %v471 = vpop.f32.mrb[0].mxu0
      %v472 = vadd.f32 %v403, %v471
      %473 = vmatprep.mubr.bf16.mxu0 0
      %474 = vmatmul.mubr.bf16.gmra.mrb[0].mxu0 %v429
      %v475 = vpop.f32.mrb[0].mxu0
      %v476 = vadd.f32 %v408, %v475
      %v477 = vpop.f32.mrb[0].mxu0
      %v478 = vadd.f32 %v408, %v477
      %v479 = vpop.f32.mrb[0].mxu0
      %v480 = vadd.f32 %v413, %v479
      %v481 = vpop.f32.mrb[0].mxu0
      %v482 = vadd.f32 %v413, %v481
      %483 = vdwg.mxu0
      %v484 = vsub.f32 0.0, %v466
      %v485 = vsub.f32 0.0, %v468
      %v486 = vsub.f32 0.0, %v470
      %v487 = vsub.f32 0.0, %v472
      %v488 = vsub.f32 0.0, %v476
      %v489 = vsub.f32 0.0, %v478
      %v490 = vsub.f32 0.0, %v480
      %v491 = vsub.f32 0.0, %v482
      %v492 = vmul.f32 %v484, 1.442695
      %v493 = vpow.pop %v492
      %v494 = vmul.f32 %v485, 1.442695
      %v495 = vpow.pop %v494
      %v496 = vmul.f32 %v486, 1.442695
      %v497 = vpow.pop %v496
      %v498 = vmul.f32 %v487, 1.442695
      %v499 = vpow.pop %v498
      %v500 = vmul.f32 %v488, 1.442695
      %v501 = vpow.pop %v500
      %v502 = vmul.f32 %v489, 1.442695
      %v503 = vpow.pop %v502
      %v504 = vmul.f32 %v490, 1.442695
      %v505 = vpow.pop %v504
      %v506 = vmul.f32 %v491, 1.442695
      %v507 = vpow.pop %v506
      %v508 = vadd.f32 %v493, 1.0
      %v509 = vadd.f32 %v495, 1.0
      %v510 = vadd.f32 %v497, 1.0
      %v511 = vadd.f32 %v499, 1.0
      %v512 = vadd.f32 %v501, 1.0
      %v513 = vadd.f32 %v503, 1.0
      %v514 = vadd.f32 %v505, 1.0
      %v515 = vadd.f32 %v507, 1.0
      %v516 = vrcp.pop %v508
      %v517 = vrcp.pop %v509
      %v518 = vrcp.pop %v510
      %v519 = vrcp.pop %v511
      %v520 = vrcp.pop %v512
      %v521 = vrcp.pop %v513
      %v522 = vrcp.pop %v514
      %v523 = vrcp.pop %v515
      %v524 = vmul.f32 %v516, %v281
      %v525 = vmul.f32 %v517, %v282
      %v526 = vmul.f32 %v518, %v283
      %v527 = vmul.f32 %v519, %v284
      %v528 = vmul.f32 %v520, %v285
      %v529 = vmul.f32 %v521, %v286
      %v530 = vmul.f32 %v522, %v287
      %v531 = vmul.f32 %v523, %v288
      %532 = vst [vmem:[%s262] sm:$0xff] %v524
      %533 = vst [vmem:[%s262 + $0x8] sm:$0xff] %v525
      %534 = vst [vmem:[%s262 + $0x10] sm:$0xff] %v526
      %535 = vst [vmem:[%s262 + $0x18] sm:$0xff] %v527
      %536 = vst [vmem:[%s262 + $0x20] sm:$0xff] %v528
      %537 = vst [vmem:[%s262 + $0x28] sm:$0xff] %v529
      %538 = vst [vmem:[%s262 + $0x30] sm:$0xff] %v530
      %539 = vst [vmem:[%s262 + $0x38] sm:$0xff] %v531
      %s540 = smul.u32 2, %s21
      %p541 = scmp.lt.s32.totalorder %s20, 1
      %s542 = scalar_select %p541, %s20, 1
      %p543 = scmp.lt.s32.totalorder %s540, 1
      %s544 = scalar_select %p543, %s540, 1
      %s545 = smul.addr %s542, 8
      %s546 = sadd.s32 %s544, %s545
      %s547 = smul.addr %s546, 8
      %s548 = scalar_lea.vmem %s5, %s547
      // Predicated region
      $region41: #{squeeze_excitation.1} parent=39 // pred_check
        %p549 = pneg %p160
      $region42: #{squeeze_excitation.1} parent=39 // pred_check_branch
        %551 = sbr.rel (%p549) target = $region44
      $region43: #{squeeze_excitation.1} parent=39 // pred_region
        %s552 = smul.u32 2, %s21
      $region44: #{squeeze_excitation.1} parent=39 // pred_fallthru
        _
    $region40: #{squeeze_excitation.1} parent=5 // pred_fallthru
      _
    %p553 = scmp.le.s32.totalorder 2, %s11
    // Predicated region
    $region45: #{squeeze_excitation.1} parent=5 // pred_check
      %p554 = pneg %p553
    $region46: #{squeeze_excitation.1} parent=5 // pred_check_branch
      %556 = sbr.rel (%p554) target = $region48
    $region47: #{squeeze_excitation.1} parent=5 // pred_region
      %s557 = ssub.s32 %s11, 2
      // Predicated region
      $region49: #{squeeze_excitation.1} parent=47 // pred_check
        %p558 = pneg %p166
      $region50: #{squeeze_excitation.1} parent=47 // pred_check_branch
        %560 = sbr.rel (%p558) target = $region52
      $region51: #{squeeze_excitation.1} parent=47 // pred_region
        %s561 = smul.u32 2, %s23
        %p562 = scmp.lt.s32.totalorder %s22, 1
        %s563 = scalar_select %p562, %s22, 1
        %p564 = scmp.lt.s32.totalorder %s561, 1
        %s565 = scalar_select %p564, %s561, 1
        %s566 = smul.addr %s563, 8
        %s567 = sadd.s32 %s565, %s566
        %s568 = smul.addr %s567, 8
        %s569 = scalar_lea.vmem %s5, %s568
      $region52: #{squeeze_excitation.1} parent=47 // pred_fallthru
        _
    $region48: #{squeeze_excitation.1} parent=5 // pred_fallthru
      _
  $region6: #{squeeze_excitation.1} parent=0 // loop_footer
    %s15 = sadd.s32 1, %s11
  $region7: #{squeeze_excitation.1} parent=0 // loop_footer_branch
    %10 = sbr.rel target = $region3
  $region8: #{squeeze_excitation.1} parent=0 // loop_exit
    _

</llo_original>
